<compile_context>
chip_gen: v7x
topology: tpu7x:2x2x1
jax: 0.10.0
libtpu: 0.0.40
codegen_flags: <defaults>
</compile_context>

<pallas_src>
import functools

import jax
import jax.numpy as jnp
from jax import lax
from jax.experimental import pallas as pl
from jax.experimental.pallas import tpu as pltpu


def _round_up(x, m):
    return (x + m - 1) // m * m


def fused_conv_bn_relu_kernel(p_ref, w_ref, b_ref, g_ref, bt_ref, o_ref, *,
                              m_valid, m_padded, eps):
    """Fused conv-as-matmul + training-mode BatchNorm + ReLU (MaxPool(1,1) = identity).

    p_ref  : (K_pad, M_pad)   im2col patches, transposed (lane dim = M)
    w_ref  : (Cout_pad, K_pad)
    b_ref, g_ref, bt_ref : (Cout_pad, 1) bias / gamma / beta
    o_ref  : (Cout_pad, M_pad)  y^T after BN+ReLU (lane-dense store)
    """
    # Conv lowered to a single MXU matmul; y stays resident in VMEM/vregs.
    y = jnp.dot(w_ref[...], p_ref[...],
                preferred_element_type=jnp.float32)          # (Cout_pad, M_pad)
    y = y + b_ref[...]                                       # + (Cout_pad, 1)

    inv_m = 1.0 / float(m_valid)
    if m_padded != m_valid:
        # Mask out padded M columns so they don't pollute the batch statistics.
        col = lax.broadcasted_iota(jnp.int32, y.shape, 1)
        valid = col < m_valid
        y_for_sum = jnp.where(valid, y, 0.0)
    else:
        valid = None
        y_for_sum = y

    mean = jnp.sum(y_for_sum, axis=1, keepdims=True) * inv_m  # (Cout_pad, 1)
    d = y - mean
    dsq = d * d
    if valid is not None:
        dsq = jnp.where(valid, dsq, 0.0)
    var = jnp.sum(dsq, axis=1, keepdims=True) * inv_m         # biased variance

    scale = g_ref[...] * lax.rsqrt(var + eps)                 # (Cout_pad, 1)
    o = d * scale + bt_ref[...]                               # single FMA tail
    o_ref[...] = jnp.maximum(o, 0.0).astype(o_ref.dtype)      # ReLU; MaxPool(1,1) = id


def asap_conv_block0(x, weight, bias, gamma, beta, *, stride=1, padding=1,
                     eps=1e-5, matmul_dtype=jnp.float32):
    """Forward of ASAP_Conv_Block0 (conv -> BN(batch stats) -> ReLU -> MaxPool(1,1))."""
    N, Cin, H, W = x.shape
    Cout, _, kh, kw = weight.shape
    Ho = (H + 2 * padding - kh) // stride + 1
    Wo = (W + 2 * padding - kw) // stride + 1
    M = N * Ho * Wo
    K = Cin * kh * kw

    K_pad = _round_up(K, 8)        # sublane-aligned contraction dim
    M_pad = _round_up(M, 128)      # lane-dense output / patches minor dim
    Cout_pad = _round_up(Cout, 8)  # sublane-aligned channel dim

    # --- im2col glue (plain JAX), built directly in transposed (K, M) layout --------
    xp = jnp.pad(x, ((0, 0), (0, 0), (padding, padding), (padding, padding)))
    cols = []
    for i in range(kh):
        for j in range(kw):
            cols.append(xp[:, :, i:i + (Ho - 1) * stride + 1:stride,
                               j:j + (Wo - 1) * stride + 1:stride])
    patches = jnp.stack(cols, axis=2)                 # (N, Cin, kh*kw, Ho, Wo)
    patches = patches.reshape(N, K, Ho * Wo)          # K = cin-major, then (kh, kw)
    patches_t = patches.transpose(1, 0, 2).reshape(K, M)   # (K, M), M = (n, ho, wo)
    patches_t = jnp.pad(patches_t.astype(jnp.float32),
                        ((0, K_pad - K), (0, M_pad - M)))

    w_t = jnp.pad(weight.reshape(Cout, K).astype(jnp.float32),
                  ((0, Cout_pad - Cout), (0, K_pad - K)))    # (Cout_pad, K_pad)

    # On v6e/v7x, bf16 operands (f32 accumulate) halve the dominant DMA traffic;
    # kept f32 here to preserve the tight reference tolerance at demo scale.
    patches_t = patches_t.astype(matmul_dtype)
    w_t = w_t.astype(matmul_dtype)

    def _col(v):
        return jnp.pad(v.astype(jnp.float32), (0, Cout_pad - Cout)).reshape(Cout_pad, 1)

    b_t, g_t, bt_t = _col(bias), _col(gamma), _col(beta)

    # Everything fits in VMEM in one shot for these shapes; grid=(1,).
    itemsize = jnp.dtype(matmul_dtype).itemsize
    working_set = 2 * (K_pad * M_pad * itemsize            # patches (double-buffered)
                       + Cout_pad * K_pad * itemsize        # weights
                       + Cout_pad * M_pad * 4               # output
                       + 3 * Cout_pad * 4)                  # bias/gamma/beta
    assert working_set < 24 * 1024 * 1024, (
        "fused single-step kernel exceeds conservative VMEM budget; "
        "tile over M for larger problems")  # TODO(synk): add M-tiled two-phase variant

    out_t = pl.pallas_call(
        functools.partial(fused_conv_bn_relu_kernel,
                          m_valid=M, m_padded=M_pad, eps=eps),
        out_shape=jax.ShapeDtypeStruct((Cout_pad, M_pad), jnp.float32),
        grid=(1,),
        in_specs=[pl.BlockSpec((K_pad, M_pad), lambda i: (0, 0)),
                  pl.BlockSpec((Cout_pad, K_pad), lambda i: (0, 0)),
                  pl.BlockSpec((Cout_pad, 1), lambda i: (0, 0)),
                  pl.BlockSpec((Cout_pad, 1), lambda i: (0, 0)),
                  pl.BlockSpec((Cout_pad, 1), lambda i: (0, 0))],
        out_specs=pl.BlockSpec((Cout_pad, M_pad), lambda i: (0, 0)),
        compiler_params=pltpu.CompilerParams(
            dimension_semantics=("arbitrary",),
            vmem_limit_bytes=32 * 1024 * 1024),
    )(patches_t, w_t, b_t, g_t, bt_t)

    # Strip padding and return NCHW like the PyTorch module.
    out_t = out_t[:Cout, :M]                                   # (Cout, N*Ho*Wo)
    return out_t.reshape(Cout, N, Ho, Wo).transpose(1, 0, 2, 3)


if __name__ == "__main__":
    key = jax.random.PRNGKey(0)
    k1, k2, k3, k4 = jax.random.split(key, 4)

    N, Cin, H, W = 2, 4, 16, 16
    Cout, ksz, stride, pad = 8, 3, 1, 1

    x = jax.random.normal(k1, (N, Cin, H, W), jnp.float32)
    save = jax.random.normal(k2, (N, Cin, H, W), jnp.float32)   # `shared` arg: forward-unused
    weight = jax.random.normal(k3, (Cout, Cin, ksz, ksz), jnp.float32) * 0.1
    bias = jax.random.normal(k4, (Cout,), jnp.float32) * 0.1
    gamma = jnp.ones((Cout,), jnp.float32)    # nn.BatchNorm2d default init
    beta = jnp.zeros((Cout,), jnp.float32)

    out = asap_conv_block0(x, weight, bias, gamma, beta,
                           stride=stride, padding=pad)
    out = jax.block_until_ready(out)

    # Pure-JAX reference check (conv -> training-mode BN -> ReLU).
    y_ref = lax.conv_general_dilated(
        x, weight, (stride, stride), [(pad, pad), (pad, pad)],
        dimension_numbers=("NCHW", "OIHW", "NCHW")) + bias[None, :, None, None]
    mean = y_ref.mean(axis=(0, 2, 3), keepdims=True)
    var = ((y_ref - mean) ** 2).mean(axis=(0, 2, 3), keepdims=True)
    ref = jnp.maximum(
        (y_ref - mean) / jnp.sqrt(var + 1e-5) * gamma[None, :, None, None]
        + beta[None, :, None, None], 0.0)

    assert out.shape == (N, Cout, H, W)
    assert jnp.allclose(out, ref, atol=1e-4, rtol=1e-4), \
        float(jnp.max(jnp.abs(out - ref)))
    print("KERNEL_OK")
</pallas_src>

<mosaic_0001>
module attributes {stable_mosaic.version = 11 : i64} {
  func.func @fused_conv_bn_relu_kernel(%arg0: i32, %arg1: memref<40x512xf32, #tpu.memory_space<vmem>>, %arg2: memref<8x40xf32, #tpu.memory_space<vmem>>, %arg3: memref<8x1xf32, #tpu.memory_space<vmem>>, %arg4: memref<8x1xf32, #tpu.memory_space<vmem>>, %arg5: memref<8x1xf32, #tpu.memory_space<vmem>>, %arg6: memref<8x512xf32, #tpu.memory_space<vmem>>) attributes {dimension_semantics = [#tpu.dimension_semantics<arbitrary>], iteration_bounds = array<i64: 1>, scalar_prefetch = 0 : i64, scratch_operands = 0 : i64, tpu.core_type = #tpu.core_type<tc>, window_params = [{pipeline_mode = #tpu.pipeline_mode<synchronous>, transform_indices = @transform_0, window_bounds = array<i64: 40, 512>}, {pipeline_mode = #tpu.pipeline_mode<synchronous>, transform_indices = @transform_1, window_bounds = array<i64: 8, 40>}, {pipeline_mode = #tpu.pipeline_mode<synchronous>, transform_indices = @transform_2, window_bounds = array<i64: 8, 1>}, {pipeline_mode = #tpu.pipeline_mode<synchronous>, transform_indices = @transform_3, window_bounds = array<i64: 8, 1>}, {pipeline_mode = #tpu.pipeline_mode<synchronous>, transform_indices = @transform_4, window_bounds = array<i64: 8, 1>}, {pipeline_mode = #tpu.pipeline_mode<synchronous>, transform_indices = @transform_5, window_bounds = array<i64: 8, 512>}]} {
    %c0 = arith.constant 0 : index
    %c0_0 = arith.constant 0 : index
    %0 = vector.load %arg2[%c0, %c0_0] : memref<8x40xf32, #tpu.memory_space<vmem>>, vector<8x40xf32>
    %c0_1 = arith.constant 0 : index
    %c0_2 = arith.constant 0 : index
    %1 = vector.load %arg1[%c0_1, %c0_2] : memref<40x512xf32, #tpu.memory_space<vmem>>, vector<40x512xf32>
    %cst = arith.constant dense<0.000000e+00> : vector<8x512xf32>
    %2 = tpu.matmul %0, %1, %cst {dimension_numbers = #tpu.dot_dimension_numbers<[1], [0], [0], [1], [0, 0, 1, 1], [], []>} : vector<8x40xf32>, vector<40x512xf32>, vector<8x512xf32> -> vector<8x512xf32>
    %c0_3 = arith.constant 0 : index
    %c0_4 = arith.constant 0 : index
    %3 = vector.load %arg3[%c0_3, %c0_4] : memref<8x1xf32, #tpu.memory_space<vmem>>, vector<8x1xf32>
    %4 = vector.broadcast %3 : vector<8x1xf32> to vector<8x512xf32>
    %5 = arith.addf %2, %4 : vector<8x512xf32>
    %cst_5 = arith.constant dense<0.000000e+00> : vector<8xf32>
    %6 = vector.multi_reduction <add>, %5, %cst_5 [1] : vector<8x512xf32> to vector<8xf32>
    %7 = vector.shape_cast %6 : vector<8xf32> to vector<8x1xf32>
    %cst_6 = arith.constant 0.001953125 : f32
    %8 = vector.broadcast %cst_6 : f32 to vector<8x1xf32>
    %9 = arith.mulf %7, %8 : vector<8x1xf32>
    %10 = vector.broadcast %9 : vector<8x1xf32> to vector<8x512xf32>
    %11 = arith.subf %5, %10 : vector<8x512xf32>
    %12 = arith.mulf %11, %11 : vector<8x512xf32>
    %cst_7 = arith.constant dense<0.000000e+00> : vector<8xf32>
    %13 = vector.multi_reduction <add>, %12, %cst_7 [1] : vector<8x512xf32> to vector<8xf32>
    %14 = vector.shape_cast %13 : vector<8xf32> to vector<8x1xf32>
    %cst_8 = arith.constant 0.001953125 : f32
    %15 = vector.broadcast %cst_8 : f32 to vector<8x1xf32>
    %16 = arith.mulf %14, %15 : vector<8x1xf32>
    %c0_9 = arith.constant 0 : index
    %c0_10 = arith.constant 0 : index
    %17 = vector.load %arg4[%c0_9, %c0_10] : memref<8x1xf32, #tpu.memory_space<vmem>>, vector<8x1xf32>
    %cst_11 = arith.constant 9.99999974E-6 : f32
    %18 = vector.broadcast %cst_11 : f32 to vector<8x1xf32>
    %19 = arith.addf %16, %18 : vector<8x1xf32>
    %20 = math.rsqrt %19 : vector<8x1xf32>
    %21 = arith.mulf %17, %20 : vector<8x1xf32>
    %22 = vector.broadcast %21 : vector<8x1xf32> to vector<8x512xf32>
    %23 = arith.mulf %11, %22 : vector<8x512xf32>
    %c0_12 = arith.constant 0 : index
    %c0_13 = arith.constant 0 : index
    %24 = vector.load %arg5[%c0_12, %c0_13] : memref<8x1xf32, #tpu.memory_space<vmem>>, vector<8x1xf32>
    %25 = vector.broadcast %24 : vector<8x1xf32> to vector<8x512xf32>
    %26 = arith.addf %23, %25 : vector<8x512xf32>
    %cst_14 = arith.constant 0.000000e+00 : f32
    %27 = vector.broadcast %cst_14 : f32 to vector<8x512xf32>
    %28 = arith.maximumf %26, %27 : vector<8x512xf32>
    %c0_15 = arith.constant 0 : index
    %c0_16 = arith.constant 0 : index
    %29 = vector.load %arg6[%c0_15, %c0_16] : memref<8x512xf32, #tpu.memory_space<vmem>>, vector<8x512xf32>
    tpu.vector_store %arg6[%c0_15, %c0_16], %28 {strides = array<i32>} : memref<8x512xf32, #tpu.memory_space<vmem>>, vector<8x512xf32>,
    return
  }
  func.func @transform_0(%arg0: i32) -> (i32, i32) {
    %c0_i32 = arith.constant 0 : i32
    %c0_i32_0 = arith.constant 0 : i32
    %c0_i32_1 = arith.constant 0 : i32
    return %c0_i32, %c0_i32_0 : i32, i32
  }
  func.func @transform_1(%arg0: i32) -> (i32, i32) {
    %c0_i32 = arith.constant 0 : i32
    %c0_i32_0 = arith.constant 0 : i32
    %c0_i32_1 = arith.constant 0 : i32
    return %c0_i32, %c0_i32_0 : i32, i32
  }
  func.func @transform_2(%arg0: i32) -> (i32, i32) {
    %c0_i32 = arith.constant 0 : i32
    %c0_i32_0 = arith.constant 0 : i32
    %c0_i32_1 = arith.constant 0 : i32
    return %c0_i32, %c0_i32_0 : i32, i32
  }
  func.func @transform_3(%arg0: i32) -> (i32, i32) {
    %c0_i32 = arith.constant 0 : i32
    %c0_i32_0 = arith.constant 0 : i32
    %c0_i32_1 = arith.constant 0 : i32
    return %c0_i32, %c0_i32_0 : i32, i32
  }
  func.func @transform_4(%arg0: i32) -> (i32, i32) {
    %c0_i32 = arith.constant 0 : i32
    %c0_i32_0 = arith.constant 0 : i32
    %c0_i32_1 = arith.constant 0 : i32
    return %c0_i32, %c0_i32_0 : i32, i32
  }
  func.func @transform_5(%arg0: i32) -> (i32, i32) {
    %c0_i32 = arith.constant 0 : i32
    %c0_i32_0 = arith.constant 0 : i32
    %c0_i32_1 = arith.constant 0 : i32
    return %c0_i32, %c0_i32_0 : i32, i32
  }
}

</mosaic_0001>

<llo_original>
// kernel: tpu_custom_call.1
$region0: #{tpu_custom_call.1}
  #allocation0 [shape = 'u32[]', space=smem, size = 0x4, offset = 0x4, fixed_abs, tag = 'smem constant byte address 0x4 - core index']
  #allocation1 [shape = 'u32[144,128]{1,0:T(1,128)}', space=vmem, size = 0x12000, scoped, tag = 'internal scratch']
  %s0 = inlined_call_operand.hbm [shape: f32[40,512], index: 0, kind: input, shape index: {}]
  %s1 = inlined_call_operand.vmem [shape: f32[8,40], index: 1, kind: input, shape index: {}]
  %s2 = inlined_call_operand.vmem [shape: f32[8,1], index: 2, kind: input, shape index: {}]
  %s3 = inlined_call_operand.vmem [shape: f32[8,1], index: 3, kind: input, shape index: {}]
  %s4 = inlined_call_operand.vmem [shape: f32[8,1], index: 4, kind: input, shape index: {}]
  %s5 = inlined_call_operand.hbm [shape: f32[8,512], index: 5, kind: output, shape index: {}]
  %s6 = sld [smem:[#allocation0]]
  $region34: #{tpu_custom_call.1} parent=0
    _
  %s8 = ssub.s32 1, %s6
  %s9 = scalar_select 0, %s8, %s6
  $region1: #{tpu_custom_call.1} parent=0
    #allocation2 [shape = 'u8[81920]{0}', space=vmem, size = 0x14000, scoped, tag = 'input window, operand 0, single buffered']
    #allocation3 [shape = 's32[1]{0}', space=sflag, size = 0x4, scoped, tag = 'scoped memory for tpu_custom_call.1']
    #allocation4 [shape = 's32[1]{0}', space=sflag, size = 0x4, scoped, tag = 'scoped memory for tpu_custom_call.1']
    #allocation5 [shape = 'u8[16384]{0}', space=vmem, size = 0x4000, scoped, tag = 'output window, operand 0, single buffered']
    %10 = vsyncpa [#allocation3], 0
    %11 = vsyncpa [#allocation4], 0
    // Predicated region
    $region2: #{tpu_custom_call.1} parent=1 // pred_check
      _
    $region3: #{tpu_custom_call.1} parent=1 // pred_check_branch
      %13 = sbr.rel (0) target = $region5
    $region4: #{tpu_custom_call.1} parent=1 // pred_region
      %s15 = ssub.s32 2560, 2560
      %16 = vsyncadd [#allocation3], %s15
      %s17 = sshll.u32 [#allocation2], 4
      %s18 = int_to_ptr.vmem [resolvable:$true] %s17
      %23 = dma.hbm_to_vmem [thread:$0]  %s0, 2560, %s18, [#allocation3], 512, 512, 32
    $region5: #{tpu_custom_call.1} parent=1 // pred_fallthru
      _
    // Predicated region
    $region6: #{tpu_custom_call.1} parent=1 // pred_check
      _
    $region7: #{tpu_custom_call.1} parent=1 // pred_check_branch
      %25 = sbr.rel (0) target = $region9
    $region8: #{tpu_custom_call.1} parent=1 // pred_region
      _
    $region9: #{tpu_custom_call.1} parent=1 // pred_fallthru
      _
    // Predicated region
    $region10: #{tpu_custom_call.1} parent=1 // pred_check
      _
    $region11: #{tpu_custom_call.1} parent=1 // pred_check_branch
      %27 = sbr.rel (0) target = $region13
    $region12: #{tpu_custom_call.1} parent=1 // pred_region
      _
    $region13: #{tpu_custom_call.1} parent=1 // pred_fallthru
      _
    // Predicated region
    $region14: #{tpu_custom_call.1} parent=1 // pred_check
      _
    $region15: #{tpu_custom_call.1} parent=1 // pred_check_branch
      %29 = sbr.rel (0) target = $region17
    $region16: #{tpu_custom_call.1} parent=1 // pred_region
      _
    $region17: #{tpu_custom_call.1} parent=1 // pred_fallthru
      _
    // Predicated region
    $region18: #{tpu_custom_call.1} parent=1 // pred_check
      _
    $region19: #{tpu_custom_call.1} parent=1 // pred_check_branch
      %31 = sbr.rel (0) target = $region21
    $region20: #{tpu_custom_call.1} parent=1 // pred_region
      _
    $region21: #{tpu_custom_call.1} parent=1 // pred_fallthru
      _
    // Predicated region
    $region22: #{tpu_custom_call.1} parent=1 // pred_check
      _
    $region23: #{tpu_custom_call.1} parent=1 // pred_check_branch
      %33 = sbr.rel (0) target = $region25
    $region24: #{tpu_custom_call.1} parent=1 // pred_region
      %34 = dma.done [#allocation3], 2560
    $region25: #{tpu_custom_call.1} parent=1 // pred_fallthru
      _
    %v35 = vld [vmem:[%s1] sm:$0xff]
    %v36 = vld [vmem:[#allocation2] sm:$0xff]
    %v37 = vld [vmem:[#allocation2 + $0x8] sm:$0xff]
    %v38 = vld [vmem:[#allocation2 + $0x10] sm:$0xff]
    %v39 = vld [vmem:[#allocation2 + $0x18] sm:$0xff]
    %v40 = vld [vmem:[#allocation2 + $0x20] sm:$0xff]
    %v41 = vld [vmem:[#allocation2 + $0x28] sm:$0xff]
    %v42 = vld [vmem:[#allocation2 + $0x30] sm:$0xff]
    %v43 = vld [vmem:[#allocation2 + $0x38] sm:$0xff]
    %v44 = vld [vmem:[#allocation2 + $0x40] sm:$0xff]
    %v45 = vld [vmem:[#allocation2 + $0x48] sm:$0xff]
    %v46 = vld [vmem:[#allocation2 + $0x50] sm:$0xff]
    %v47 = vld [vmem:[#allocation2 + $0x58] sm:$0xff]
    %v48 = vld [vmem:[#allocation2 + $0x60] sm:$0xff]
    %v49 = vld [vmem:[#allocation2 + $0x68] sm:$0xff]
    %v50 = vld [vmem:[#allocation2 + $0x70] sm:$0xff]
    %v51 = vld [vmem:[#allocation2 + $0x78] sm:$0xff]
    %v52 = vld [vmem:[#allocation2 + $0x80] sm:$0xff]
    %v53 = vld [vmem:[#allocation2 + $0x88] sm:$0xff]
    %v54 = vld [vmem:[#allocation2 + $0x90] sm:$0xff]
    %v55 = vld [vmem:[#allocation2 + $0x98] sm:$0xff]
    %v56 = vld [vmem:[%s2] sm:$0xff]
    %58 = vset.pattern.permute.xlu0 0
    %59 = vperm.xlu0 %58, %v56
    %v60 = vpop.permute.xlu0 %59
    %vm62 = vcmask 326656
    %v64 = vsel %vm62, %v35, 0
    %66 = vmatprep.subr.mxu0 %v37
    %67 = vmatpush1.msra.mxu0 %v36
    %68 = vmatprep.subr.mxu0 %v41
    %69 = vmatpush1.msra.mxu0 %v40
    %70 = vmatprep.subr.mxu0 %v45
    %71 = vmatpush1.msra.mxu0 %v44
    %72 = vmatprep.subr.mxu0 %v49
    %73 = vmatpush1.msra.mxu0 %v48
    %74 = vmatprep.subr.mxu0 %v53
    %75 = vmatpush1.msra.mxu0 %v52
    %76 = vmatprep.subr.mxu0 0.0
    %77 = vmatpush1.msra.mxu0 0.0
    %78 = vmatprep.subr.mxu0 0.0
    %79 = vmatpush1.msra.mxu0 0.0
    %80 = vmatprep.subr.mxu0 0.0
    %81 = vmatpush1.msra.mxu0 0.0
    %82 = vmatprep.subr.mxu0 0.0
    %83 = vmatpush1.msra.mxu0 0.0
    %84 = vmatprep.subr.mxu0 0.0
    %85 = vmatpush1.msra.mxu0 0.0
    %86 = vmatprep.subr.mxu0 0.0
    %87 = vmatpush1.msra.mxu0 0.0
    %88 = vmatprep.subr.mxu0 0.0
    %89 = vmatpush1.msra.mxu0 0.0
    %90 = vmatprep.subr.mxu0 0.0
    %91 = vmatpush1.msra.mxu0 0.0
    %92 = vmatprep.subr.mxu0 0.0
    %93 = vmatpush1.msra.mxu0 0.0
    %94 = vmatprep.subr.mxu0 0.0
    %95 = vmatpush1.msra.mxu0 0.0
    %96 = vmatprep.subr.mxu0 0.0
    %97 = vmatpush1.msra.mxu0 0.0
    %98 = vmatprep.subr.mxu0 0.0
    %99 = vmatpush1.msra.mxu0 0.0
    %100 = vmatprep.subr.mxu0 0.0
    %101 = vmatpush1.msra.mxu0 0.0
    %102 = vmatprep.subr.mxu0 0.0
    %103 = vmatpush1.msra.mxu0 0.0
    %104 = vmatprep.subr.mxu0 0.0
    %105 = vmatpush1.msra.mxu0 0.0
    %106 = vmatprep.subr.mxu0 0.0
    %107 = vmatpush1.msra.mxu0 0.0
    %108 = vmatprep.subr.mxu0 0.0
    %109 = vmatpush1.msra.mxu0 0.0
    %110 = vmatprep.subr.mxu0 0.0
    %111 = vmatpush1.msra.mxu0 0.0
    %112 = vmatprep.subr.mxu0 0.0
    %113 = vmatpush1.msra.mxu0 0.0
    %114 = vmatprep.subr.mxu0 0.0
    %115 = vmatpush1.msra.mxu0 0.0
    %116 = vmatprep.subr.mxu0 0.0
    %117 = vmatpush1.msra.mxu0 0.0
    %118 = vmatprep.subr.mxu0 0.0
    %119 = vmatpush1.msra.mxu0 0.0
    %120 = vmatprep.subr.mxu0 0.0
    %121 = vmatpush1.msra.mxu0 0.0
    %122 = vmatprep.subr.mxu0 0.0
    %123 = vmatpush1.msra.mxu0 0.0
    %124 = vmatprep.subr.mxu0 0.0
    %125 = vmatpush1.msra.mxu0 0.0
    %126 = vmatprep.subr.mxu0 0.0
    %127 = vmatpush1.msra.mxu0 0.0
    %128 = vmatprep.subr.mxu0 0.0
    %129 = vmatpush1.msra.mxu0 0.0
    %130 = vmatprep.mubr.f32.mxu0 0.0
    %131 = vmatmul.mubr.f32.gmra.mrb[0].mxu0 %v64
    %v132 = vpop.f32.mrb[0].mxu0
    %v133 = vadd.f32 %v60, %v132
    %v134 = vpop.f32.mrb[0].mxu0
    %v135 = vadd.f32 %v60, %v134
    %136 = vdwg.mxu0
    %137 = vmatprep.subr.mxu0 %v39
    %138 = vmatpush1.msra.mxu0 %v38
    %139 = vmatprep.subr.mxu0 %v43
    %140 = vmatpush1.msra.mxu0 %v42
    %141 = vmatprep.subr.mxu0 %v47
    %142 = vmatpush1.msra.mxu0 %v46
    %143 = vmatprep.subr.mxu0 %v51
    %144 = vmatpush1.msra.mxu0 %v50
    %145 = vmatprep.subr.mxu0 %v55
    %146 = vmatpush1.msra.mxu0 %v54
    %147 = vmatprep.subr.mxu0 0.0
    %148 = vmatpush1.msra.mxu0 0.0
    %149 = vmatprep.subr.mxu0 0.0
    %150 = vmatpush1.msra.mxu0 0.0
    %151 = vmatprep.subr.mxu0 0.0
    %152 = vmatpush1.msra.mxu0 0.0
    %153 = vmatprep.subr.mxu0 0.0
    %154 = vmatpush1.msra.mxu0 0.0
    %155 = vmatprep.subr.mxu0 0.0
    %156 = vmatpush1.msra.mxu0 0.0
    %157 = vmatprep.subr.mxu0 0.0
    %158 = vmatpush1.msra.mxu0 0.0
    %159 = vmatprep.subr.mxu0 0.0
    %160 = vmatpush1.msra.mxu0 0.0
    %161 = vmatprep.subr.mxu0 0.0
    %162 = vmatpush1.msra.mxu0 0.0
    %163 = vmatprep.subr.mxu0 0.0
    %164 = vmatpush1.msra.mxu0 0.0
    %165 = vmatprep.subr.mxu0 0.0
    %166 = vmatpush1.msra.mxu0 0.0
    %167 = vmatprep.subr.mxu0 0.0
    %168 = vmatpush1.msra.mxu0 0.0
    %169 = vmatprep.subr.mxu0 0.0
    %170 = vmatpush1.msra.mxu0 0.0
    %171 = vmatprep.subr.mxu0 0.0
    %172 = vmatpush1.msra.mxu0 0.0
    %173 = vmatprep.subr.mxu0 0.0
    %174 = vmatpush1.msra.mxu0 0.0
    %175 = vmatprep.subr.mxu0 0.0
    %176 = vmatpush1.msra.mxu0 0.0
    %177 = vmatprep.subr.mxu0 0.0
    %178 = vmatpush1.msra.mxu0 0.0
    %179 = vmatprep.subr.mxu0 0.0
    %180 = vmatpush1.msra.mxu0 0.0
    %181 = vmatprep.subr.mxu0 0.0
    %182 = vmatpush1.msra.mxu0 0.0
    %183 = vmatprep.subr.mxu0 0.0
    %184 = vmatpush1.msra.mxu0 0.0
    %185 = vmatprep.subr.mxu0 0.0
    %186 = vmatpush1.msra.mxu0 0.0
    %187 = vmatprep.subr.mxu0 0.0
    %188 = vmatpush1.msra.mxu0 0.0
    %189 = vmatprep.subr.mxu0 0.0
    %190 = vmatpush1.msra.mxu0 0.0
    %191 = vmatprep.subr.mxu0 0.0
    %192 = vmatpush1.msra.mxu0 0.0
    %193 = vmatprep.subr.mxu0 0.0
    %194 = vmatpush1.msra.mxu0 0.0
    %195 = vmatprep.subr.mxu0 0.0
    %196 = vmatpush1.msra.mxu0 0.0
    %197 = vmatprep.subr.mxu0 0.0
    %198 = vmatpush1.msra.mxu0 0.0
    %199 = vmatprep.subr.mxu0 0.0
    %200 = vmatpush1.msra.mxu0 0.0
    %201 = vmatprep.mubr.f32.mxu0 0.0
    %202 = vmatmul.mubr.f32.gmra.mrb[0].mxu0 %v64
    %v203 = vpop.f32.mrb[0].mxu0
    %v204 = vadd.f32 %v60, %v203
    %v205 = vpop.f32.mrb[0].mxu0
    %v206 = vadd.f32 %v60, %v205
    %207 = vdwg.mxu0
    %v208 = vadd.f32 %v133, %v135
    %v209 = vadd.f32 %v208, %v204
    %v210 = vadd.f32 %v209, %v206
    %211 = vadd.xlane.f32.xlu0 %v210
    %v212 = vpop.xlane.xlu0 %211
    %v213 = vmul.f32 %v212, 0.001953125
    %v214 = vsub.f32 %v133, %v213
    %v215 = vsub.f32 %v135, %v213
    %v216 = vsub.f32 %v204, %v213
    %v217 = vsub.f32 %v206, %v213
    %v218 = vmul.f32 %v214, %v214
    %v219 = vmul.f32 %v215, %v215
    %v220 = vmul.f32 %v216, %v216
    %v221 = vmul.f32 %v217, %v217
    %v222 = vadd.f32 %v218, %v219
    %v223 = vadd.f32 %v222, %v220
    %v224 = vadd.f32 %v223, %v221
    %225 = vadd.xlane.f32.xlu0 %v224
    %v226 = vpop.xlane.xlu0 %225
    %v227 = vmul.f32 %v226, 0.001953125
    %v228 = vld [vmem:[%s3] sm:$0xff]
    %v229 = vadd.f32 %v227, 1e-05
    %v230 = vrsqrt.pop %v229
    %v231 = vmul.f32 %v228, %v230
    %233 = vset.pattern.permute.xlu0 0
    %234 = vperm.xlu0 %233, %v231
    %v235 = vpop.permute.xlu0 %234
    %v237 = vmul.f32 %v214, %v235
    %v238 = vmul.f32 %v215, %v235
    %v239 = vmul.f32 %v216, %v235
    %v240 = vmul.f32 %v217, %v235
    %v241 = vld [vmem:[%s4] sm:$0xff]
    %243 = vset.pattern.permute.xlu0 0
    %244 = vperm.xlu0 %243, %v241
    %v245 = vpop.permute.xlu0 %244
    %v247 = vadd.f32 %v237, %v245
    %v248 = vadd.f32 %v238, %v245
    %v249 = vadd.f32 %v239, %v245
    %v250 = vadd.f32 %v240, %v245
    %v251 = vmax.f32 %v247, 0.0
    %v252 = vmax.f32 %v248, 0.0
    %v253 = vmax.f32 %v249, 0.0
    %v254 = vmax.f32 %v250, 0.0
    %255 = vst [vmem:[#allocation5] sm:$0xff] %v251
    %256 = vst [vmem:[#allocation5 + $0x8] sm:$0xff] %v252
    %257 = vst [vmem:[#allocation5 + $0x10] sm:$0xff] %v253
    %258 = vst [vmem:[#allocation5 + $0x18] sm:$0xff] %v254
    // Predicated region
    $region26: #{tpu_custom_call.1} parent=1 // pred_check
      _
    $region27: #{tpu_custom_call.1} parent=1 // pred_check_branch
      %260 = sbr.rel (0) target = $region29
    $region28: #{tpu_custom_call.1} parent=1 // pred_region
      %s262 = ssub.s32 512, 512
      %263 = vsyncadd [#allocation4], %s262
      %s265 = sshll.u32 [#allocation5], 4
      %s266 = int_to_ptr.vmem [resolvable:$true] %s265
      %268 = dma.vmem_to_hbm [thread:$0]  %s266, 512, %s5, [#allocation4]
    $region29: #{tpu_custom_call.1} parent=1 // pred_fallthru
      _
    // Predicated region
    $region30: #{tpu_custom_call.1} parent=1 // pred_check
      _
    $region31: #{tpu_custom_call.1} parent=1 // pred_check_branch
      %270 = sbr.rel (0) target = $region33
    $region32: #{tpu_custom_call.1} parent=1 // pred_region
      %271 = dma.done [#allocation4], 512
    $region33: #{tpu_custom_call.1} parent=1 // pred_fallthru
      _
    %272 = vsyncpa [#allocation3], 1
    %273 = vsyncpa [#allocation4], 1

</llo_original>
